<compile_context>
chip_gen: v6e
topology: v6e:2x2x1
jax: 0.10.0
libtpu: 0.0.40
codegen_flags: <defaults>
</compile_context>

<pallas_src>
from functools import partial

import jax
import jax.numpy as jnp
from jax.experimental import pallas as pl
from jax.experimental.pallas import tpu as pltpu


def _loss_kernel(model_ref, search_ref, pos_ref, neg_ref, neut_ref, out_ref, *,
                 margin):
    f32 = jnp.float32
    eps_sq = jnp.float32(1e-16)          # (1e-8)^2, torch cosine_similarity eps

    m = model_ref[...]                   # (TB, D), native dtype
    s = search_ref[...]                  # (TB, D)
    pos = pos_ref[...]                   # (TB, P, D)
    neg = neg_ref[...]                   # (TB, N, D)
    neut = neut_ref[...]                 # (TB, U, D)

    P = pos.shape[1]
    N = neg.shape[1]
    U = neut.shape[1]

    # Both anchors stacked -> each encoding set is contracted exactly once.
    anchors = jnp.stack([m, s], axis=1)                       # (TB, 2, D)

    # Squared norms, computed ONCE per tensor (hoisted out of the cosine).
    def _sq_norm(x):
        xf = x.astype(f32)
        return jnp.sum(xf * xf, axis=-1)

    a_sq = _sq_norm(anchors)                                  # (TB, 2)
    pos_sq = _sq_norm(pos)                                    # (TB, P)
    neg_sq = _sq_norm(neg)                                    # (TB, N)
    neut_sq = _sq_norm(neut)                                  # (TB, U)

    # Batched contraction (MXU), f32 accumulation; inputs kept in native dtype.
    def _dots(encs):
        return jnp.einsum('bxd,bkd->bxk', anchors, encs,
                          preferred_element_type=f32)         # (TB, 2, K)

    def _cos(dots, e_sq):
        # torch F.cosine_similarity: dot * rsqrt(max(|a|^2 * |e|^2, eps^2))
        denom_sq = jnp.maximum(a_sq[:, :, None] * e_sq[:, None, :], eps_sq)
        return dots * jax.lax.rsqrt(denom_sq)                 # rsqrt -> EUP slot

    c_pos = _cos(_dots(pos), pos_sq)                          # (TB, 2, P)
    c_neg = _cos(_dots(neg), neg_sq)                          # (TB, 2, N)
    c_neut = _cos(_dots(neut), neut_sq)                       # (TB, 2, U)

    m_pos, s_pos = c_pos[:, 0, :], c_pos[:, 1, :]
    m_neg, s_neg = c_neg[:, 0, :], c_neg[:, 1, :]
    m_neut, s_neut = c_neut[:, 0, :], c_neut[:, 1, :]

    # _find_results / _calc_reward (sort-free equivalent; differs only on ties).
    max_neg = jnp.max(s_neg, axis=1, keepdims=True)           # (TB, 1)
    max_neut = jnp.max(s_neut, axis=1, keepdims=True)         # (TB, 1)
    max_nonpos = jnp.maximum(max_neg, max_neut)
    num_positive = jnp.sum((s_pos > max_nonpos).astype(f32), axis=1,
                           keepdims=True)                     # (TB, 1)
    target_loss = 1.0 - num_positive * (1.0 / P)              # (TB, 1)
    results = jnp.where(max_neg >= max_neut, 1.0, 0.0)        # (TB, 1)

    # forward() loss
    neg_score = (jnp.sum(m_neg, axis=1, keepdims=True)
                 + jnp.sum(m_neut, axis=1, keepdims=True)) * (1.0 / (N + U))
    pos_mean = jnp.sum(m_pos, axis=1, keepdims=True) * (1.0 / P)
    loss = jnp.maximum((neg_score - pos_mean) * target_loss + margin, 0.0)

    # Per-tile partial sums packed into a lane-dense (1, 8, 128) block:
    #   lane 0 = sum(loss), lane 1 = sum(target_loss), lane 2 = sum(results).
    loss_sum = jnp.sum(loss)
    tl_sum = jnp.sum(target_loss)
    res_sum = jnp.sum(results)
    lane = jax.lax.broadcasted_iota(jnp.int32, (8, 128), 1)
    packed = (jnp.where(lane == 0, loss_sum, 0.0)
              + jnp.where(lane == 1, tl_sum, 0.0)
              + jnp.where(lane == 2, res_sum, 0.0))
    out_ref[...] = packed[None].astype(out_ref.dtype)


def _pick_batch_tile(B, row_bytes):
    """Largest batch tile TB with B % TB == 0 and (TB % 8 == 0 or TB == B),
    sized so the double-buffered tile (+ f32 temps) stays well inside VMEM
    on all of v5e/v6e/v7x (v7x has only 64 MiB)."""
    budget = 6 << 20                       # ~6 MiB of raw input rows per tile
    max_rows = max(8, budget // max(row_bytes, 1))
    if B <= max_rows:
        return B
    cap = (min(max_rows, B) // 8) * 8
    for tb in range(cap, 7, -8):
        if B % tb == 0:
            return tb
    return B   # no aligned divisor of B: fall back to a single whole-batch tile


def multi_objective_scoring_loss(model_out, search_out, pos_encs, neg_encs,
                                 neutral_encs, margin=0.2):
    """Returns (loss.mean(), target_loss.mean(), results.mean()) as in PyTorch."""
    B, D = model_out.shape
    P = pos_encs.shape[1]
    N = neg_encs.shape[1]
    U = neutral_encs.shape[1]

    itemsize = max(jnp.dtype(model_out.dtype).itemsize,
                   jnp.dtype(pos_encs.dtype).itemsize)
    row_bytes = (2 * D + (P + N + U) * D) * itemsize
    TB = _pick_batch_tile(B, row_bytes)
    G = B // TB

    # Explicit VMEM budget: double-buffered inputs + in-kernel f32 temps + slack.
    vmem_bytes = int(min(max(4 * TB * row_bytes + (2 << 20), 16 << 20), 48 << 20))

    kernel = partial(_loss_kernel, margin=float(margin))

    partial_sums = pl.pallas_call(
        kernel,
        out_shape=jax.ShapeDtypeStruct((G, 8, 128), jnp.float32),
        grid=(G,),
        in_specs=[
            pl.BlockSpec((TB, D), lambda i: (i, 0)),
            pl.BlockSpec((TB, D), lambda i: (i, 0)),
            pl.BlockSpec((TB, P, D), lambda i: (i, 0, 0)),
            pl.BlockSpec((TB, N, D), lambda i: (i, 0, 0)),
            pl.BlockSpec((TB, U, D), lambda i: (i, 0, 0)),
        ],
        out_specs=pl.BlockSpec((1, 8, 128), lambda i: (i, 0, 0)),
        compiler_params=pltpu.CompilerParams(
            dimension_semantics=("parallel",),
            vmem_limit_bytes=vmem_bytes,
        ),
    )(model_out, search_out, pos_encs, neg_encs, neutral_encs)

    # Tiny post-kernel reduce over per-tile partial sums (G x 3 values).
    totals = jnp.sum(partial_sums[:, 0, :], axis=0)
    inv_b = 1.0 / B
    return totals[0] * inv_b, totals[1] * inv_b, totals[2] * inv_b


if __name__ == "__main__":
    B, P, N, U, D = 2, 8, 8, 8, 32
    key = jax.random.PRNGKey(0)
    k1, k2, k3, k4, k5 = jax.random.split(key, 5)

    model_out = jax.random.normal(k1, (B, D), jnp.float32)
    search_out = jax.random.normal(k2, (B, D), jnp.float32)
    pos_encs = jax.random.normal(k3, (B, P, D), jnp.float32)
    neg_encs = jax.random.normal(k4, (B, N, D), jnp.float32)
    neutral_encs = jax.random.normal(k5, (B, U, D), jnp.float32)

    fn = jax.jit(multi_objective_scoring_loss)
    out = fn(model_out, search_out, pos_encs, neg_encs, neutral_encs)
    jax.block_until_ready(out)
    print("KERNEL_OK")
</pallas_src>

<mosaic_0001>
module attributes {stable_mosaic.version = 11 : i64} {
  func.func @_loss_kernel(%arg0: i32, %arg1: memref<2x32xf32, #tpu.memory_space<vmem>>, %arg2: memref<2x32xf32, #tpu.memory_space<vmem>>, %arg3: memref<2x8x32xf32, #tpu.memory_space<vmem>>, %arg4: memref<2x8x32xf32, #tpu.memory_space<vmem>>, %arg5: memref<2x8x32xf32, #tpu.memory_space<vmem>>, %arg6: memref<1x8x128xf32, #tpu.memory_space<vmem>>) attributes {dimension_semantics = [#tpu.dimension_semantics<parallel>], iteration_bounds = array<i64: 1>, scalar_prefetch = 0 : i64, scratch_operands = 0 : i64, tpu.core_type = #tpu.core_type<tc>, window_params = [{transform_indices = @transform_0, window_bounds = array<i64: 2, 32>}, {transform_indices = @transform_1, window_bounds = array<i64: 2, 32>}, {transform_indices = @transform_2, window_bounds = array<i64: 2, 8, 32>}, {transform_indices = @transform_3, window_bounds = array<i64: 2, 8, 32>}, {transform_indices = @transform_4, window_bounds = array<i64: 2, 8, 32>}, {transform_indices = @transform_5, window_bounds = array<i64: 1, 8, 128>}]} {
    %c0 = arith.constant 0 : index
    %c0_0 = arith.constant 0 : index
    %0 = vector.load %arg1[%c0, %c0_0] : memref<2x32xf32, #tpu.memory_space<vmem>>, vector<2x32xf32>
    %c0_1 = arith.constant 0 : index
    %c0_2 = arith.constant 0 : index
    %1 = vector.load %arg2[%c0_1, %c0_2] : memref<2x32xf32, #tpu.memory_space<vmem>>, vector<2x32xf32>
    %c0_3 = arith.constant 0 : index
    %c0_4 = arith.constant 0 : index
    %c0_5 = arith.constant 0 : index
    %2 = vector.load %arg3[%c0_3, %c0_4, %c0_5] : memref<2x8x32xf32, #tpu.memory_space<vmem>>, vector<2x8x32xf32>
    %c0_6 = arith.constant 0 : index
    %c0_7 = arith.constant 0 : index
    %c0_8 = arith.constant 0 : index
    %3 = vector.load %arg4[%c0_6, %c0_7, %c0_8] : memref<2x8x32xf32, #tpu.memory_space<vmem>>, vector<2x8x32xf32>
    %c0_9 = arith.constant 0 : index
    %c0_10 = arith.constant 0 : index
    %c0_11 = arith.constant 0 : index
    %4 = vector.load %arg5[%c0_9, %c0_10, %c0_11] : memref<2x8x32xf32, #tpu.memory_space<vmem>>, vector<2x8x32xf32>
    %5 = vector.shape_cast %0 : vector<2x32xf32> to vector<2x1x32xf32>
    %6 = vector.shape_cast %1 : vector<2x32xf32> to vector<2x1x32xf32>
    %7 = tpu.concatenate %5, %6 in 1 : vector<2x1x32xf32>, vector<2x1x32xf32> -> vector<2x2x32xf32>
    %8 = arith.mulf %7, %7 : vector<2x2x32xf32>
    %cst = arith.constant dense<0.000000e+00> : vector<2x2xf32>
    %9 = vector.multi_reduction <add>, %8, %cst [2] : vector<2x2x32xf32> to vector<2x2xf32>
    %10 = arith.mulf %2, %2 : vector<2x8x32xf32>
    %cst_12 = arith.constant dense<0.000000e+00> : vector<2x8xf32>
    %11 = vector.multi_reduction <add>, %10, %cst_12 [2] : vector<2x8x32xf32> to vector<2x8xf32>
    %12 = arith.mulf %3, %3 : vector<2x8x32xf32>
    %cst_13 = arith.constant dense<0.000000e+00> : vector<2x8xf32>
    %13 = vector.multi_reduction <add>, %12, %cst_13 [2] : vector<2x8x32xf32> to vector<2x8xf32>
    %14 = arith.mulf %4, %4 : vector<2x8x32xf32>
    %cst_14 = arith.constant dense<0.000000e+00> : vector<2x8xf32>
    %15 = vector.multi_reduction <add>, %14, %cst_14 [2] : vector<2x8x32xf32> to vector<2x8xf32>
    "tpu.trace_start"() <{level = 10 : i32, message = "bxd,bkd->bxk"}> : () -> ()
    %cst_15 = arith.constant dense<0.000000e+00> : vector<2x2x8xf32>
    %16 = tpu.matmul %7, %2, %cst_15 {dimension_numbers = #tpu.dot_dimension_numbers<[2], [2], [1], [1], [0, 0, 0, 1, 1, 1], [0], [0]>} : vector<2x2x32xf32>, vector<2x8x32xf32>, vector<2x2x8xf32> -> vector<2x2x8xf32>
    "tpu.trace_stop"() : () -> ()
    %17 = vector.shape_cast %9 : vector<2x2xf32> to vector<2x2x1xf32>
    %18 = vector.shape_cast %11 : vector<2x8xf32> to vector<2x1x8xf32>
    %19 = vector.broadcast %17 : vector<2x2x1xf32> to vector<2x2x8xf32>
    %20 = vector.broadcast %18 : vector<2x1x8xf32> to vector<2x2x8xf32>
    %21 = arith.mulf %19, %20 : vector<2x2x8xf32>
    %cst_16 = arith.constant 1.000000e-16 : f32
    %22 = vector.broadcast %cst_16 : f32 to vector<2x2x8xf32>
    %23 = arith.maximumf %21, %22 : vector<2x2x8xf32>
    %24 = math.rsqrt %23 : vector<2x2x8xf32>
    %25 = arith.mulf %16, %24 : vector<2x2x8xf32>
    "tpu.trace_start"() <{level = 10 : i32, message = "bxd,bkd->bxk"}> : () -> ()
    %cst_17 = arith.constant dense<0.000000e+00> : vector<2x2x8xf32>
    %26 = tpu.matmul %7, %3, %cst_17 {dimension_numbers = #tpu.dot_dimension_numbers<[2], [2], [1], [1], [0, 0, 0, 1, 1, 1], [0], [0]>} : vector<2x2x32xf32>, vector<2x8x32xf32>, vector<2x2x8xf32> -> vector<2x2x8xf32>
    "tpu.trace_stop"() : () -> ()
    %27 = vector.shape_cast %9 : vector<2x2xf32> to vector<2x2x1xf32>
    %28 = vector.shape_cast %13 : vector<2x8xf32> to vector<2x1x8xf32>
    %29 = vector.broadcast %27 : vector<2x2x1xf32> to vector<2x2x8xf32>
    %30 = vector.broadcast %28 : vector<2x1x8xf32> to vector<2x2x8xf32>
    %31 = arith.mulf %29, %30 : vector<2x2x8xf32>
    %cst_18 = arith.constant 1.000000e-16 : f32
    %32 = vector.broadcast %cst_18 : f32 to vector<2x2x8xf32>
    %33 = arith.maximumf %31, %32 : vector<2x2x8xf32>
    %34 = math.rsqrt %33 : vector<2x2x8xf32>
    %35 = arith.mulf %26, %34 : vector<2x2x8xf32>
    "tpu.trace_start"() <{level = 10 : i32, message = "bxd,bkd->bxk"}> : () -> ()
    %cst_19 = arith.constant dense<0.000000e+00> : vector<2x2x8xf32>
    %36 = tpu.matmul %7, %4, %cst_19 {dimension_numbers = #tpu.dot_dimension_numbers<[2], [2], [1], [1], [0, 0, 0, 1, 1, 1], [0], [0]>} : vector<2x2x32xf32>, vector<2x8x32xf32>, vector<2x2x8xf32> -> vector<2x2x8xf32>
    "tpu.trace_stop"() : () -> ()
    %37 = vector.shape_cast %9 : vector<2x2xf32> to vector<2x2x1xf32>
    %38 = vector.shape_cast %15 : vector<2x8xf32> to vector<2x1x8xf32>
    %39 = vector.broadcast %37 : vector<2x2x1xf32> to vector<2x2x8xf32>
    %40 = vector.broadcast %38 : vector<2x1x8xf32> to vector<2x2x8xf32>
    %41 = arith.mulf %39, %40 : vector<2x2x8xf32>
    %cst_20 = arith.constant 1.000000e-16 : f32
    %42 = vector.broadcast %cst_20 : f32 to vector<2x2x8xf32>
    %43 = arith.maximumf %41, %42 : vector<2x2x8xf32>
    %44 = math.rsqrt %43 : vector<2x2x8xf32>
    %45 = arith.mulf %36, %44 : vector<2x2x8xf32>
    %46 = vector.extract_strided_slice %25 {offsets = [0, 0, 0], sizes = [2, 1, 8], strides = [1, 1, 1]} : vector<2x2x8xf32> to vector<2x1x8xf32>
    %47 = vector.shape_cast %46 : vector<2x1x8xf32> to vector<2x8xf32>
    %48 = vector.extract_strided_slice %25 {offsets = [0, 1, 0], sizes = [2, 1, 8], strides = [1, 1, 1]} : vector<2x2x8xf32> to vector<2x1x8xf32>
    %49 = vector.shape_cast %48 : vector<2x1x8xf32> to vector<2x8xf32>
    %50 = vector.extract_strided_slice %35 {offsets = [0, 0, 0], sizes = [2, 1, 8], strides = [1, 1, 1]} : vector<2x2x8xf32> to vector<2x1x8xf32>
    %51 = vector.shape_cast %50 : vector<2x1x8xf32> to vector<2x8xf32>
    %52 = vector.extract_strided_slice %35 {offsets = [0, 1, 0], sizes = [2, 1, 8], strides = [1, 1, 1]} : vector<2x2x8xf32> to vector<2x1x8xf32>
    %53 = vector.shape_cast %52 : vector<2x1x8xf32> to vector<2x8xf32>
    %54 = vector.extract_strided_slice %45 {offsets = [0, 0, 0], sizes = [2, 1, 8], strides = [1, 1, 1]} : vector<2x2x8xf32> to vector<2x1x8xf32>
    %55 = vector.shape_cast %54 : vector<2x1x8xf32> to vector<2x8xf32>
    %56 = vector.extract_strided_slice %45 {offsets = [0, 1, 0], sizes = [2, 1, 8], strides = [1, 1, 1]} : vector<2x2x8xf32> to vector<2x1x8xf32>
    %57 = vector.shape_cast %56 : vector<2x1x8xf32> to vector<2x8xf32>
    %cst_21 = arith.constant dense<0xFF800000> : vector<2xf32>
    %58 = vector.multi_reduction <maximumf>, %53, %cst_21 [1] : vector<2x8xf32> to vector<2xf32>
    %59 = vector.shape_cast %58 : vector<2xf32> to vector<2x1xf32>
    %cst_22 = arith.constant dense<0xFF800000> : vector<2xf32>
    %60 = vector.multi_reduction <maximumf>, %57, %cst_22 [1] : vector<2x8xf32> to vector<2xf32>
    %61 = vector.shape_cast %60 : vector<2xf32> to vector<2x1xf32>
    %62 = arith.maximumf %59, %61 : vector<2x1xf32>
    %63 = vector.broadcast %62 : vector<2x1xf32> to vector<2x8xf32>
    %64 = arith.cmpf ogt, %49, %63 : vector<2x8xf32>
    %65 = arith.extui %64 : vector<2x8xi1> to vector<2x8xi32>
    %66 = arith.sitofp %65 : vector<2x8xi32> to vector<2x8xf32>
    %cst_23 = arith.constant dense<0.000000e+00> : vector<2xf32>
    %67 = vector.multi_reduction <add>, %66, %cst_23 [1] : vector<2x8xf32> to vector<2xf32>
    %68 = vector.shape_cast %67 : vector<2xf32> to vector<2x1xf32>
    %cst_24 = arith.constant 1.250000e-01 : f32
    %69 = vector.broadcast %cst_24 : f32 to vector<2x1xf32>
    %70 = arith.mulf %68, %69 : vector<2x1xf32>
    %cst_25 = arith.constant 1.000000e+00 : f32
    %71 = vector.broadcast %cst_25 : f32 to vector<2x1xf32>
    %72 = arith.subf %71, %70 : vector<2x1xf32>
    %73 = arith.cmpf oge, %59, %61 : vector<2x1xf32>
    %cst_26 = arith.constant 1.000000e+00 : f32
    %cst_27 = arith.constant 0.000000e+00 : f32
    %74 = vector.broadcast %cst_26 : f32 to vector<2x1xf32>
    %75 = vector.broadcast %cst_27 : f32 to vector<2x1xf32>
    %76 = arith.select %73, %74, %75 : vector<2x1xi1>, vector<2x1xf32>
    %cst_28 = arith.constant dense<0.000000e+00> : vector<2xf32>
    %77 = vector.multi_reduction <add>, %51, %cst_28 [1] : vector<2x8xf32> to vector<2xf32>
    %78 = vector.shape_cast %77 : vector<2xf32> to vector<2x1xf32>
    %cst_29 = arith.constant dense<0.000000e+00> : vector<2xf32>
    %79 = vector.multi_reduction <add>, %55, %cst_29 [1] : vector<2x8xf32> to vector<2xf32>
    %80 = vector.shape_cast %79 : vector<2xf32> to vector<2x1xf32>
    %81 = arith.addf %78, %80 : vector<2x1xf32>
    %cst_30 = arith.constant 6.250000e-02 : f32
    %82 = vector.broadcast %cst_30 : f32 to vector<2x1xf32>
    %83 = arith.mulf %81, %82 : vector<2x1xf32>
    %cst_31 = arith.constant dense<0.000000e+00> : vector<2xf32>
    %84 = vector.multi_reduction <add>, %47, %cst_31 [1] : vector<2x8xf32> to vector<2xf32>
    %85 = vector.shape_cast %84 : vector<2xf32> to vector<2x1xf32>
    %cst_32 = arith.constant 1.250000e-01 : f32
    %86 = vector.broadcast %cst_32 : f32 to vector<2x1xf32>
    %87 = arith.mulf %85, %86 : vector<2x1xf32>
    %88 = arith.subf %83, %87 : vector<2x1xf32>
    %89 = arith.mulf %88, %72 : vector<2x1xf32>
    %cst_33 = arith.constant 2.000000e-01 : f32
    %90 = vector.broadcast %cst_33 : f32 to vector<2x1xf32>
    %91 = arith.addf %89, %90 : vector<2x1xf32>
    %cst_34 = arith.constant 0.000000e+00 : f32
    %92 = vector.broadcast %cst_34 : f32 to vector<2x1xf32>
    %93 = arith.maximumf %91, %92 : vector<2x1xf32>
    %94 = vector.shape_cast %93 : vector<2x1xf32> to vector<1x2x1xf32>
    %cst_35 = arith.constant dense<0.000000e+00> : vector<1xf32>
    %95 = vector.multi_reduction <add>, %94, %cst_35 [1, 2] : vector<1x2x1xf32> to vector<1xf32>
    %96 = vector.shape_cast %95 : vector<1xf32> to vector<1x1x1xf32>
    %97 = vector.extract %96[0, 0, 0] : f32 from vector<1x1x1xf32>
    %98 = vector.shape_cast %72 : vector<2x1xf32> to vector<1x2x1xf32>
    %cst_36 = arith.constant dense<0.000000e+00> : vector<1xf32>
    %99 = vector.multi_reduction <add>, %98, %cst_36 [1, 2] : vector<1x2x1xf32> to vector<1xf32>
    %100 = vector.shape_cast %99 : vector<1xf32> to vector<1x1x1xf32>
    %101 = vector.extract %100[0, 0, 0] : f32 from vector<1x1x1xf32>
    %102 = vector.shape_cast %76 : vector<2x1xf32> to vector<1x2x1xf32>
    %cst_37 = arith.constant dense<0.000000e+00> : vector<1xf32>
    %103 = vector.multi_reduction <add>, %102, %cst_37 [1, 2] : vector<1x2x1xf32> to vector<1xf32>
    %104 = vector.shape_cast %103 : vector<1xf32> to vector<1x1x1xf32>
    %105 = vector.extract %104[0, 0, 0] : f32 from vector<1x1x1xf32>
    %106 = tpu.iota {dimensions = array<i32: 1>} : vector<8x128xi32>
    %c0_i32 = arith.constant 0 : i32
    %107 = vector.broadcast %c0_i32 : i32 to vector<8x128xi32>
    %108 = arith.cmpi eq, %106, %107 : vector<8x128xi32>
    %cst_38 = arith.constant 0.000000e+00 : f32
    %109 = vector.broadcast %97 : f32 to vector<8x128xf32>
    %110 = vector.broadcast %cst_38 : f32 to vector<8x128xf32>
    %111 = arith.select %108, %109, %110 : vector<8x128xi1>, vector<8x128xf32>
    %c1_i32 = arith.constant 1 : i32
    %112 = vector.broadcast %c1_i32 : i32 to vector<8x128xi32>
    %113 = arith.cmpi eq, %106, %112 : vector<8x128xi32>
    %cst_39 = arith.constant 0.000000e+00 : f32
    %114 = vector.broadcast %101 : f32 to vector<8x128xf32>
    %115 = vector.broadcast %cst_39 : f32 to vector<8x128xf32>
    %116 = arith.select %113, %114, %115 : vector<8x128xi1>, vector<8x128xf32>
    %117 = arith.addf %111, %116 : vector<8x128xf32>
    %c2_i32 = arith.constant 2 : i32
    %118 = vector.broadcast %c2_i32 : i32 to vector<8x128xi32>
    %119 = arith.cmpi eq, %106, %118 : vector<8x128xi32>
    %cst_40 = arith.constant 0.000000e+00 : f32
    %120 = vector.broadcast %105 : f32 to vector<8x128xf32>
    %121 = vector.broadcast %cst_40 : f32 to vector<8x128xf32>
    %122 = arith.select %119, %120, %121 : vector<8x128xi1>, vector<8x128xf32>
    %123 = arith.addf %117, %122 : vector<8x128xf32>
    %124 = vector.shape_cast %123 : vector<8x128xf32> to vector<1x8x128xf32>
    %c0_41 = arith.constant 0 : index
    %c0_42 = arith.constant 0 : index
    %c0_43 = arith.constant 0 : index
    %125 = vector.load %arg6[%c0_41, %c0_42, %c0_43] : memref<1x8x128xf32, #tpu.memory_space<vmem>>, vector<1x8x128xf32>
    tpu.vector_store %arg6[%c0_41, %c0_42, %c0_43], %124 {strides = array<i32>} : memref<1x8x128xf32, #tpu.memory_space<vmem>>, vector<1x8x128xf32>,
    return
  }
  func.func @transform_0(%arg0: i32) -> (i32, i32) {
    %c0_i32 = arith.constant 0 : i32
    %c0_i32_0 = arith.constant 0 : i32
    return %arg0, %c0_i32 : i32, i32
  }
  func.func @transform_1(%arg0: i32) -> (i32, i32) {
    %c0_i32 = arith.constant 0 : i32
    %c0_i32_0 = arith.constant 0 : i32
    return %arg0, %c0_i32 : i32, i32
  }
  func.func @transform_2(%arg0: i32) -> (i32, i32, i32) {
    %c0_i32 = arith.constant 0 : i32
    %c0_i32_0 = arith.constant 0 : i32
    %c0_i32_1 = arith.constant 0 : i32
    return %arg0, %c0_i32, %c0_i32_0 : i32, i32, i32
  }
  func.func @transform_3(%arg0: i32) -> (i32, i32, i32) {
    %c0_i32 = arith.constant 0 : i32
    %c0_i32_0 = arith.constant 0 : i32
    %c0_i32_1 = arith.constant 0 : i32
    return %arg0, %c0_i32, %c0_i32_0 : i32, i32, i32
  }
  func.func @transform_4(%arg0: i32) -> (i32, i32, i32) {
    %c0_i32 = arith.constant 0 : i32
    %c0_i32_0 = arith.constant 0 : i32
    %c0_i32_1 = arith.constant 0 : i32
    return %arg0, %c0_i32, %c0_i32_0 : i32, i32, i32
  }
  func.func @transform_5(%arg0: i32) -> (i32, i32, i32) {
    %c0_i32 = arith.constant 0 : i32
    %c0_i32_0 = arith.constant 0 : i32
    %c0_i32_1 = arith.constant 0 : i32
    return %arg0, %c0_i32, %c0_i32_0 : i32, i32, i32
  }
}

</mosaic_0001>

<llo_original>
// kernel: multi_objective_scoring_loss.1
$region0: #{multi_objective_scoring_loss.1}
  #allocation0 [shape = 'u32[]', space=smem, size = 0x4, offset = 0x4, fixed_abs, tag = 'smem constant byte address 0x4 - core index']
  #allocation1 [shape = 'u32[144,128]{1,0:T(1,128)}', space=vmem, size = 0x12000, scoped, tag = 'internal scratch']
  %s0 = inlined_call_operand.hbm [shape: f32[2,32], index: 0, kind: input, shape index: {}]
  %s1 = inlined_call_operand.hbm [shape: f32[2,32], index: 1, kind: input, shape index: {}]
  %s2 = inlined_call_operand.hbm [shape: f32[2,8,32], index: 2, kind: input, shape index: {}]
  %s3 = inlined_call_operand.hbm [shape: f32[2,8,32], index: 3, kind: input, shape index: {}]
  %s4 = inlined_call_operand.hbm [shape: f32[2,8,32], index: 4, kind: input, shape index: {}]
  %s5 = inlined_call_operand.vmem [shape: f32[1,8,128], index: 5, kind: output, shape index: {}]
  %s6 = sld [smem:[#allocation0]]
  $region50: #{multi_objective_scoring_loss.1} parent=0
    _
  %s8 = ssub.s32 1, %s6
  %s9 = scalar_select 0, %s8, %s6
  $region1: #{multi_objective_scoring_loss.1} parent=0
    #allocation2 [shape = 'u8[1024]{0}', space=vmem, size = 0x400, scoped, tag = 'input window, operand 0, single buffered']
    #allocation3 [shape = 's32[1]{0}', space=sflag, size = 0x4, scoped, tag = 'scoped memory for multi_objective_scoring_loss.1']
    #allocation4 [shape = 'u8[1024]{0}', space=vmem, size = 0x400, scoped, tag = 'input window, operand 1, single buffered']
    #allocation5 [shape = 's32[1]{0}', space=sflag, size = 0x4, scoped, tag = 'scoped memory for multi_objective_scoring_loss.1']
    #allocation6 [shape = 'u8[8192]{0}', space=vmem, size = 0x2000, scoped, tag = 'input window, operand 2, single buffered']
    #allocation7 [shape = 'u8[8192]{0}', space=vmem, size = 0x2000, scoped, tag = 'input window, operand 3, single buffered']
    #allocation8 [shape = 's32[1]{0}', space=sflag, size = 0x4, scoped, tag = 'scoped memory for multi_objective_scoring_loss.1']
    #allocation9 [shape = 'u8[8192]{0}', space=vmem, size = 0x2000, scoped, tag = 'input window, operand 4, single buffered']
    %10 = vsyncpa [#allocation3], 0
    %11 = vsyncpa [#allocation5], 0
    %12 = vsyncpa [#allocation8], 0
    // Predicated region
    $region2: #{multi_objective_scoring_loss.1} parent=1 // pred_check
      _
    $region3: #{multi_objective_scoring_loss.1} parent=1 // pred_check_branch
      %14 = sbr.rel (0) target = $region5
    $region4: #{multi_objective_scoring_loss.1} parent=1 // pred_region
      %s16 = ssub.s32 32, 32
      %17 = vsyncadd [#allocation3], %s16
      %s19 = sshll.u32 [#allocation2], 4
      %s20 = int_to_ptr.vmem [resolvable:$true] %s19
      %22 = dma.hbm_to_vmem [thread:$0]  %s0, 32, %s20, [#allocation3]
    $region5: #{multi_objective_scoring_loss.1} parent=1 // pred_fallthru
      _
    // Predicated region
    $region6: #{multi_objective_scoring_loss.1} parent=1 // pred_check
      _
    $region7: #{multi_objective_scoring_loss.1} parent=1 // pred_check_branch
      %24 = sbr.rel (0) target = $region9
    $region8: #{multi_objective_scoring_loss.1} parent=1 // pred_region
      %s26 = ssub.s32 32, 32
      %27 = vsyncadd [#allocation5], %s26
      %s29 = sshll.u32 [#allocation4], 4
      %s30 = int_to_ptr.vmem [resolvable:$true] %s29
      %32 = dma.hbm_to_vmem [thread:$0]  %s1, 32, %s30, [#allocation5]
    $region9: #{multi_objective_scoring_loss.1} parent=1 // pred_fallthru
      _
    // Predicated region
    $region10: #{multi_objective_scoring_loss.1} parent=1 // pred_check
      _
    $region11: #{multi_objective_scoring_loss.1} parent=1 // pred_check_branch
      %34 = sbr.rel (0) target = $region13
    $region12: #{multi_objective_scoring_loss.1} parent=1 // pred_region
      %s36 = ssub.s32 256, 256
      %37 = vsyncadd [#allocation5], %s36
      %s38 = sshll.u32 [#allocation6], 4
      %s39 = int_to_ptr.vmem [resolvable:$true] %s38
      %44 = dma.hbm_to_vmem [thread:$0]  %s2, 256, %s39, [#allocation5], 128, 128, 8
    $region13: #{multi_objective_scoring_loss.1} parent=1 // pred_fallthru
      _
    // Predicated region
    $region14: #{multi_objective_scoring_loss.1} parent=1 // pred_check
      _
    $region15: #{multi_objective_scoring_loss.1} parent=1 // pred_check_branch
      %46 = sbr.rel (0) target = $region17
    $region16: #{multi_objective_scoring_loss.1} parent=1 // pred_region
      %s48 = ssub.s32 256, 256
      %49 = vsyncadd [#allocation8], %s48
      %s50 = sshll.u32 [#allocation7], 4
      %s51 = int_to_ptr.vmem [resolvable:$true] %s50
      %56 = dma.hbm_to_vmem [thread:$0]  %s3, 256, %s51, [#allocation8], 128, 128, 8
    $region17: #{multi_objective_scoring_loss.1} parent=1 // pred_fallthru
      _
    // Predicated region
    $region18: #{multi_objective_scoring_loss.1} parent=1 // pred_check
      _
    $region19: #{multi_objective_scoring_loss.1} parent=1 // pred_check_branch
      %58 = sbr.rel (0) target = $region21
    $region20: #{multi_objective_scoring_loss.1} parent=1 // pred_region
      %s60 = ssub.s32 256, 256
      %61 = vsyncadd [#allocation8], %s60
      %s62 = sshll.u32 [#allocation9], 4
      %s63 = int_to_ptr.vmem [resolvable:$true] %s62
      %68 = dma.hbm_to_vmem [thread:$0]  %s4, 256, %s63, [#allocation8], 128, 128, 8
    $region21: #{multi_objective_scoring_loss.1} parent=1 // pred_fallthru
      _
    // Predicated region
    $region22: #{multi_objective_scoring_loss.1} parent=1 // pred_check
      _
    $region23: #{multi_objective_scoring_loss.1} parent=1 // pred_check_branch
      %70 = sbr.rel (0) target = $region25
    $region24: #{multi_objective_scoring_loss.1} parent=1 // pred_region
      %71 = dma.done [#allocation3], 32
    $region25: #{multi_objective_scoring_loss.1} parent=1 // pred_fallthru
      _
    // Predicated region
    $region26: #{multi_objective_scoring_loss.1} parent=1 // pred_check
      _
    $region27: #{multi_objective_scoring_loss.1} parent=1 // pred_check_branch
      %73 = sbr.rel (0) target = $region29
    $region28: #{multi_objective_scoring_loss.1} parent=1 // pred_region
      %74 = dma.done [#allocation5], 32
    $region29: #{multi_objective_scoring_loss.1} parent=1 // pred_fallthru
      _
    // Predicated region
    $region30: #{multi_objective_scoring_loss.1} parent=1 // pred_check
      _
    $region31: #{multi_objective_scoring_loss.1} parent=1 // pred_check_branch
      %76 = sbr.rel (0) target = $region33
    $region32: #{multi_objective_scoring_loss.1} parent=1 // pred_region
      %77 = dma.done [#allocation5], 256
    $region33: #{multi_objective_scoring_loss.1} parent=1 // pred_fallthru
      _
    // Predicated region
    $region34: #{multi_objective_scoring_loss.1} parent=1 // pred_check
      _
    $region35: #{multi_objective_scoring_loss.1} parent=1 // pred_check_branch
      %79 = sbr.rel (0) target = $region37
    $region36: #{multi_objective_scoring_loss.1} parent=1 // pred_region
      %80 = dma.done [#allocation8], 256
    $region37: #{multi_objective_scoring_loss.1} parent=1 // pred_fallthru
      _
    // Predicated region
    $region38: #{multi_objective_scoring_loss.1} parent=1 // pred_check
      _
    $region39: #{multi_objective_scoring_loss.1} parent=1 // pred_check_branch
      %82 = sbr.rel (0) target = $region41
    $region40: #{multi_objective_scoring_loss.1} parent=1 // pred_region
      %83 = dma.done [#allocation8], 256
    $region41: #{multi_objective_scoring_loss.1} parent=1 // pred_fallthru
      _
    %v84 = vld [vmem:[#allocation2] sm:$0x3]
    %v85 = vld [vmem:[#allocation4] sm:$0x3]
    %v86 = vld [vmem:[#allocation6] sm:$0xff]
    %v87 = vld [vmem:[#allocation6 + $0x8] sm:$0xff]
    %v88 = vld [vmem:[#allocation7] sm:$0xff]
    %v89 = vld [vmem:[#allocation7 + $0x8] sm:$0xff]
    %v90 = vld [vmem:[#allocation9] sm:$0xff]
    %v91 = vld [vmem:[#allocation9 + $0x8] sm:$0xff]
    %v94 = vunpack.c.l.s4 1966171168
    %v95 = vunpack.c.0.s8 %v94
    %v96 = vlaneseq
    %v97 = vshrl.u32 %v96, 7
    %v98 = vsub.s32 %v95, %v97
    %v99 = vrot.slane %v84, %v98
    %v100 = vcombine.high %v99, %v99
    %v102 = vunpack.c.l.s4 1966171168
    %v103 = vunpack.c.0.s8 %v102
    %v104 = vlaneseq
    %v105 = vshrl.u32 %v104, 7
    %v106 = vsub.s32 %v103, %v105
    %v107 = vrot.slane %v99, %v106
    %v109 = vunpack.c.l.s4 1966171168
    %v110 = vunpack.c.0.s8 %v109
    %v111 = vlaneseq
    %v112 = vshrl.u32 %v111, 7
    %v113 = vsub.s32 %v110, %v112
    %v114 = vrot.slane %v100, %v113
    %v119 = vunpack.c.l.s4 1966171168
    %v120 = vunpack.c.0.s8 %v119
    %v121 = vlaneseq
    %v122 = vshrl.u32 %v121, 7
    %v123 = vsub.s32 %v120, %v122
    %v124 = vrot.slane %v85, %v123
    %v125 = vcombine.high %v124, %v124
    %v127 = vunpack.c.l.s4 1966171168
    %v128 = vunpack.c.0.s8 %v127
    %v129 = vlaneseq
    %v130 = vshrl.u32 %v129, 7
    %v131 = vsub.s32 %v128, %v130
    %v132 = vrot.slane %v124, %v131
    %v134 = vunpack.c.l.s4 1966171168
    %v135 = vunpack.c.0.s8 %v134
    %v136 = vlaneseq
    %v137 = vshrl.u32 %v136, 7
    %v138 = vsub.s32 %v135, %v137
    %v139 = vrot.slane %v125, %v138
    %v140 = vlaneseq
    %v141 = vshrl.u32 %v140, 7
    %v142 = vsub.s32 0, %v141
    %v143 = vrot.slane %v132, %v142
    %v144 = vlaneseq
    %v145 = vshrl.u32 %v144, 7
    %v146 = vsub.s32 0, %v145
    %v147 = vrot.slane %v139, %v146
    %vm150 = vcmask 1040384
    %v151 = vsel %vm150, %v107, %v143
    %v152 = vsel %vm150, %v114, %v147
    %v153 = vmul.f32 %v151, %v151
    %v154 = vmul.f32 %v152, %v152
    %vm155 = vcmask 254976
    %v156 = vsel %vm155, %v153, 0.0
    %157 = vadd.xlane.f32.xlu0 %v156
    %v158 = vpop.xlane.xlu0 %157
    %v159 = vsel %vm155, %v154, 0.0
    %160 = vadd.xlane.f32.xlu0 %v159
    %v161 = vpop.xlane.xlu0 %160
    %v162 = vmul.f32 %v86, %v86
    %v163 = vmul.f32 %v87, %v87
    %vm164 = vcmask 261120
    %v165 = vsel %vm164, %v162, 0.0
    %166 = vadd.xlane.f32.xlu0 %v165
    %v167 = vpop.xlane.xlu0 %166
    %v168 = vsel %vm164, %v163, 0.0
    %169 = vadd.xlane.f32.xlu0 %v168
    %v170 = vpop.xlane.xlu0 %169
    %v171 = vmul.f32 %v88, %v88
    %v172 = vmul.f32 %v89, %v89
    %v173 = vsel %vm164, %v171, 0.0
    %174 = vadd.xlane.f32.xlu0 %v173
    %v175 = vpop.xlane.xlu0 %174
    %v176 = vsel %vm164, %v172, 0.0
    %177 = vadd.xlane.f32.xlu0 %v176
    %v178 = vpop.xlane.xlu0 %177
    %v179 = vmul.f32 %v90, %v90
    %v180 = vmul.f32 %v91, %v91
    %v181 = vsel %vm164, %v179, 0.0
    %182 = vadd.xlane.f32.xlu0 %v181
    %v183 = vpop.xlane.xlu0 %182
    %v184 = vsel %vm164, %v180, 0.0
    %185 = vadd.xlane.f32.xlu0 %v184
    %v186 = vpop.xlane.xlu0 %185
    %v188 = vsel %vm164, %v151, 0
    %v191 = vsel %vm164, %v86, 0
    %193 = vmatprep.subr.mxu0 0.0
    %194 = vmatpush1.xpose.msra.mxu0 0.0
    %195 = vmatprep.subr.mxu0 0.0
    %196 = vmatpush1.xpose.msra.mxu0 0.0
    %197 = vmatprep.subr.mxu0 0.0
    %198 = vmatpush1.xpose.msra.mxu0 0.0
    %199 = vmatprep.subr.mxu0 0.0
    %200 = vmatpush1.xpose.msra.mxu0 0.0
    %201 = vmatprep.subr.mxu0 0.0
    %202 = vmatpush1.xpose.msra.mxu0 0.0
    %203 = vmatprep.subr.mxu0 0.0
    %204 = vmatpush1.xpose.msra.mxu0 0.0
    %205 = vmatprep.subr.mxu0 0.0
    %206 = vmatpush1.xpose.msra.mxu0 0.0
    %207 = vmatprep.subr.mxu0 0.0
    %208 = vmatpush1.xpose.msra.mxu0 0.0
    %209 = vmatprep.subr.mxu0 0.0
    %210 = vmatpush1.xpose.msra.mxu0 0.0
    %211 = vmatprep.subr.mxu0 0.0
    %212 = vmatpush1.xpose.msra.mxu0 0.0
    %213 = vmatprep.subr.mxu0 0.0
    %214 = vmatpush1.xpose.msra.mxu0 0.0
    %215 = vmatprep.subr.mxu0 0.0
    %216 = vmatpush1.xpose.msra.mxu0 0.0
    %217 = vmatprep.subr.mxu0 0.0
    %218 = vmatpush1.xpose.msra.mxu0 0.0
    %219 = vmatprep.subr.mxu0 0.0
    %220 = vmatpush1.xpose.msra.mxu0 0.0
    %221 = vmatprep.subr.mxu0 0.0
    %222 = vmatpush1.xpose.msra.mxu0 0.0
    %223 = vmatprep.subr.mxu0 0.0
    %224 = vmatpush1.xpose.msra.mxu0 %v191
    %225 = vmatprep.subr.mxu0 0.0
    %226 = vmatpush2.xpose.msra.mxu0 0.0
    %227 = vmatprep.subr.mxu0 0.0
    %228 = vmatpush2.xpose.msra.mxu0 0.0
    %229 = vmatprep.subr.mxu0 0.0
    %230 = vmatpush2.xpose.msra.mxu0 0.0
    %231 = vmatprep.subr.mxu0 0.0
    %232 = vmatpush2.xpose.msra.mxu0 0.0
    %233 = vmatprep.subr.mxu0 0.0
    %234 = vmatpush2.xpose.msra.mxu0 0.0
    %235 = vmatprep.subr.mxu0 0.0
    %236 = vmatpush2.xpose.msra.mxu0 0.0
    %237 = vmatprep.subr.mxu0 0.0
    %238 = vmatpush2.xpose.msra.mxu0 0.0
    %239 = vmatprep.subr.mxu0 0.0
    %240 = vmatpush2.xpose.msra.mxu0 0.0
    %241 = vmatprep.subr.mxu0 0.0
    %242 = vmatpush2.xpose.msra.mxu0 0.0
    %243 = vmatprep.subr.mxu0 0.0
    %244 = vmatpush2.xpose.msra.mxu0 0.0
    %245 = vmatprep.subr.mxu0 0.0
    %246 = vmatpush2.xpose.msra.mxu0 0.0
    %247 = vmatprep.subr.mxu0 0.0
    %248 = vmatpush2.xpose.msra.mxu0 0.0
    %249 = vmatprep.subr.mxu0 0.0
    %250 = vmatpush2.xpose.msra.mxu0 0.0
    %251 = vmatprep.subr.mxu0 0.0
    %252 = vmatpush2.xpose.msra.mxu0 0.0
    %253 = vmatprep.subr.mxu0 0.0
    %254 = vmatpush2.xpose.msra.mxu0 0.0
    %255 = vmatprep.subr.mxu0 0.0
    %256 = vmatpush2.xpose.msra.mxu0 0.0
    %257 = vmatprep.mubr.f32.mxu0 0.0
    %258 = vmatmul.mubr.f32.gmra.mxu0 %v188
    %v259 = vpop.f32.mrf.mxu0
    %v260 = vadd.f32 0.0, %v259
    %v261 = vpop.f32.mrf.mxu0
    %262 = vdwg.mxu0
    %v264 = vsel %vm164, %v152, 0
    %v267 = vsel %vm164, %v87, 0
    %269 = vmatprep.subr.mxu0 0.0
    %270 = vmatpush1.xpose.msra.mxu0 0.0
    %271 = vmatprep.subr.mxu0 0.0
    %272 = vmatpush1.xpose.msra.mxu0 0.0
    %273 = vmatprep.subr.mxu0 0.0
    %274 = vmatpush1.xpose.msra.mxu0 0.0
    %275 = vmatprep.subr.mxu0 0.0
    %276 = vmatpush1.xpose.msra.mxu0 0.0
    %277 = vmatprep.subr.mxu0 0.0
    %278 = vmatpush1.xpose.msra.mxu0 0.0
    %279 = vmatprep.subr.mxu0 0.0
    %280 = vmatpush1.xpose.msra.mxu0 0.0
    %281 = vmatprep.subr.mxu0 0.0
    %282 = vmatpush1.xpose.msra.mxu0 0.0
    %283 = vmatprep.subr.mxu0 0.0
    %284 = vmatpush1.xpose.msra.mxu0 0.0
    %285 = vmatprep.subr.mxu0 0.0
    %286 = vmatpush1.xpose.msra.mxu0 0.0
    %287 = vmatprep.subr.mxu0 0.0
    %288 = vmatpush1.xpose.msra.mxu0 0.0
    %289 = vmatprep.subr.mxu0 0.0
    %290 = vmatpush1.xpose.msra.mxu0 0.0
    %291 = vmatprep.subr.mxu0 0.0
    %292 = vmatpush1.xpose.msra.mxu0 0.0
    %293 = vmatprep.subr.mxu0 0.0
    %294 = vmatpush1.xpose.msra.mxu0 0.0
    %295 = vmatprep.subr.mxu0 0.0
    %296 = vmatpush1.xpose.msra.mxu0 0.0
    %297 = vmatprep.subr.mxu0 0.0
    %298 = vmatpush1.xpose.msra.mxu0 0.0
    %299 = vmatprep.subr.mxu0 0.0
    %300 = vmatpush1.xpose.msra.mxu0 %v267
    %301 = vmatprep.subr.mxu0 0.0
    %302 = vmatpush2.xpose.msra.mxu0 0.0
    %303 = vmatprep.subr.mxu0 0.0
    %304 = vmatpush2.xpose.msra.mxu0 0.0
    %305 = vmatprep.subr.mxu0 0.0
    %306 = vmatpush2.xpose.msra.mxu0 0.0
    %307 = vmatprep.subr.mxu0 0.0
    %308 = vmatpush2.xpose.msra.mxu0 0.0
    %309 = vmatprep.subr.mxu0 0.0
    %310 = vmatpush2.xpose.msra.mxu0 0.0
    %311 = vmatprep.subr.mxu0 0.0
    %312 = vmatpush2.xpose.msra.mxu0 0.0
    %313 = vmatprep.subr.mxu0 0.0
    %314 = vmatpush2.xpose.msra.mxu0 0.0
    %315 = vmatprep.subr.mxu0 0.0
    %316 = vmatpush2.xpose.msra.mxu0 0.0
    %317 = vmatprep.subr.mxu0 0.0
    %318 = vmatpush2.xpose.msra.mxu0 0.0
    %319 = vmatprep.subr.mxu0 0.0
    %320 = vmatpush2.xpose.msra.mxu0 0.0
    %321 = vmatprep.subr.mxu0 0.0
    %322 = vmatpush2.xpose.msra.mxu0 0.0
    %323 = vmatprep.subr.mxu0 0.0
    %324 = vmatpush2.xpose.msra.mxu0 0.0
    %325 = vmatprep.subr.mxu0 0.0
    %326 = vmatpush2.xpose.msra.mxu0 0.0
    %327 = vmatprep.subr.mxu0 0.0
    %328 = vmatpush2.xpose.msra.mxu0 0.0
    %329 = vmatprep.subr.mxu0 0.0
    %330 = vmatpush2.xpose.msra.mxu0 0.0
    %331 = vmatprep.subr.mxu0 0.0
    %332 = vmatpush2.xpose.msra.mxu0 0.0
    %333 = vmatprep.mubr.f32.mxu0 0.0
    %334 = vmatmul.mubr.f32.gmra.mxu0 %v264
    %v335 = vpop.f32.mrf.mxu0
    %v336 = vadd.f32 0.0, %v335
    %v337 = vpop.f32.mrf.mxu0
    %338 = vdwg.mxu0
    %v341 = vlaneseq
    %v342 = vand.u32 %v341, 127
    %v343 = vlaneseq
    %v344 = vshrl.u32 %v343, 7
    %v345 = vsub.s32 %v342, %v344
    %v346 = vrot.slane %v167, %v345
    %v347 = vlaneseq
    %v348 = vshrl.u32 %v347, 7
    %v349 = vsub.s32 %v342, %v348
    %v350 = vrot.slane %v170, %v349
    %vm351 = vcmask 1041409
    %v354 = vmul.f32 %v158, %v346
    %v355 = vmul.f32 %v161, %v350
    %v356 = vmax.f32 %v354, 1e-16
    %v357 = vmax.f32 %v355, 1e-16
    %v358 = vrsqrt.pop %v356
    %v359 = vrsqrt.pop %v357
    %v360 = vmul.f32 %v260, %v358
    %v361 = vmul.f32 %v336, %v359
    %v363 = vsel %vm164, %v88, 0
    %365 = vmatprep.subr.mxu0 0.0
    %366 = vmatpush1.xpose.msra.mxu0 0.0
    %367 = vmatprep.subr.mxu0 0.0
    %368 = vmatpush1.xpose.msra.mxu0 0.0
    %369 = vmatprep.subr.mxu0 0.0
    %370 = vmatpush1.xpose.msra.mxu0 0.0
    %371 = vmatprep.subr.mxu0 0.0
    %372 = vmatpush1.xpose.msra.mxu0 0.0
    %373 = vmatprep.subr.mxu0 0.0
    %374 = vmatpush1.xpose.msra.mxu0 0.0
    %375 = vmatprep.subr.mxu0 0.0
    %376 = vmatpush1.xpose.msra.mxu0 0.0
    %377 = vmatprep.subr.mxu0 0.0
    %378 = vmatpush1.xpose.msra.mxu0 0.0
    %379 = vmatprep.subr.mxu0 0.0
    %380 = vmatpush1.xpose.msra.mxu0 0.0
    %381 = vmatprep.subr.mxu0 0.0
    %382 = vmatpush1.xpose.msra.mxu0 0.0
    %383 = vmatprep.subr.mxu0 0.0
    %384 = vmatpush1.xpose.msra.mxu0 0.0
    %385 = vmatprep.subr.mxu0 0.0
    %386 = vmatpush1.xpose.msra.mxu0 0.0
    %387 = vmatprep.subr.mxu0 0.0
    %388 = vmatpush1.xpose.msra.mxu0 0.0
    %389 = vmatprep.subr.mxu0 0.0
    %390 = vmatpush1.xpose.msra.mxu0 0.0
    %391 = vmatprep.subr.mxu0 0.0
    %392 = vmatpush1.xpose.msra.mxu0 0.0
    %393 = vmatprep.subr.mxu0 0.0
    %394 = vmatpush1.xpose.msra.mxu0 0.0
    %395 = vmatprep.subr.mxu0 0.0
    %396 = vmatpush1.xpose.msra.mxu0 %v363
    %397 = vmatprep.subr.mxu0 0.0
    %398 = vmatpush2.xpose.msra.mxu0 0.0
    %399 = vmatprep.subr.mxu0 0.0
    %400 = vmatpush2.xpose.msra.mxu0 0.0
    %401 = vmatprep.subr.mxu0 0.0
    %402 = vmatpush2.xpose.msra.mxu0 0.0
    %403 = vmatprep.subr.mxu0 0.0
    %404 = vmatpush2.xpose.msra.mxu0 0.0
    %405 = vmatprep.subr.mxu0 0.0
    %406 = vmatpush2.xpose.msra.mxu0 0.0
    %407 = vmatprep.subr.mxu0 0.0
    %408 = vmatpush2.xpose.msra.mxu0 0.0
    %409 = vmatprep.subr.mxu0 0.0
    %410 = vmatpush2.xpose.msra.mxu0 0.0
    %411 = vmatprep.subr.mxu0 0.0
    %412 = vmatpush2.xpose.msra.mxu0 0.0
    %413 = vmatprep.subr.mxu0 0.0
    %414 = vmatpush2.xpose.msra.mxu0 0.0
    %415 = vmatprep.subr.mxu0 0.0
    %416 = vmatpush2.xpose.msra.mxu0 0.0
    %417 = vmatprep.subr.mxu0 0.0
    %418 = vmatpush2.xpose.msra.mxu0 0.0
    %419 = vmatprep.subr.mxu0 0.0
    %420 = vmatpush2.xpose.msra.mxu0 0.0
    %421 = vmatprep.subr.mxu0 0.0
    %422 = vmatpush2.xpose.msra.mxu0 0.0
    %423 = vmatprep.subr.mxu0 0.0
    %424 = vmatpush2.xpose.msra.mxu0 0.0
    %425 = vmatprep.subr.mxu0 0.0
    %426 = vmatpush2.xpose.msra.mxu0 0.0
    %427 = vmatprep.subr.mxu0 0.0
    %428 = vmatpush2.xpose.msra.mxu0 0.0
    %429 = vmatprep.mubr.f32.mxu0 0.0
    %430 = vmatmul.mubr.f32.gmra.mxu0 %v188
    %v431 = vpop.f32.mrf.mxu0
    %v432 = vadd.f32 0.0, %v431
    %v433 = vpop.f32.mrf.mxu0
    %434 = vdwg.mxu0
    %v436 = vsel %vm164, %v89, 0
    %438 = vmatprep.subr.mxu0 0.0
    %439 = vmatpush1.xpose.msra.mxu0 0.0
    %440 = vmatprep.subr.mxu0 0.0
    %441 = vmatpush1.xpose.msra.mxu0 0.0
    %442 = vmatprep.subr.mxu0 0.0
    %443 = vmatpush1.xpose.msra.mxu0 0.0
    %444 = vmatprep.subr.mxu0 0.0
    %445 = vmatpush1.xpose.msra.mxu0 0.0
    %446 = vmatprep.subr.mxu0 0.0
    %447 = vmatpush1.xpose.msra.mxu0 0.0
    %448 = vmatprep.subr.mxu0 0.0
    %449 = vmatpush1.xpose.msra.mxu0 0.0
    %450 = vmatprep.subr.mxu0 0.0
    %451 = vmatpush1.xpose.msra.mxu0 0.0
    %452 = vmatprep.subr.mxu0 0.0
    %453 = vmatpush1.xpose.msra.mxu0 0.0
    %454 = vmatprep.subr.mxu0 0.0
    %455 = vmatpush1.xpose.msra.mxu0 0.0
    %456 = vmatprep.subr.mxu0 0.0
    %457 = vmatpush1.xpose.msra.mxu0 0.0
    %458 = vmatprep.subr.mxu0 0.0
    %459 = vmatpush1.xpose.msra.mxu0 0.0
    %460 = vmatprep.subr.mxu0 0.0
    %461 = vmatpush1.xpose.msra.mxu0 0.0
    %462 = vmatprep.subr.mxu0 0.0
    %463 = vmatpush1.xpose.msra.mxu0 0.0
    %464 = vmatprep.subr.mxu0 0.0
    %465 = vmatpush1.xpose.msra.mxu0 0.0
    %466 = vmatprep.subr.mxu0 0.0
    %467 = vmatpush1.xpose.msra.mxu0 0.0
    %468 = vmatprep.subr.mxu0 0.0
    %469 = vmatpush1.xpose.msra.mxu0 %v436
    %470 = vmatprep.subr.mxu0 0.0
    %471 = vmatpush2.xpose.msra.mxu0 0.0
    %472 = vmatprep.subr.mxu0 0.0
    %473 = vmatpush2.xpose.msra.mxu0 0.0
    %474 = vmatprep.subr.mxu0 0.0
    %475 = vmatpush2.xpose.msra.mxu0 0.0
    %476 = vmatprep.subr.mxu0 0.0
    %477 = vmatpush2.xpose.msra.mxu0 0.0
    %478 = vmatprep.subr.mxu0 0.0
    %479 = vmatpush2.xpose.msra.mxu0 0.0
    %480 = vmatprep.subr.mxu0 0.0
    %481 = vmatpush2.xpose.msra.mxu0 0.0
    %482 = vmatprep.subr.mxu0 0.0
    %483 = vmatpush2.xpose.msra.mxu0 0.0
    %484 = vmatprep.subr.mxu0 0.0
    %485 = vmatpush2.xpose.msra.mxu0 0.0
    %486 = vmatprep.subr.mxu0 0.0
    %487 = vmatpush2.xpose.msra.mxu0 0.0
    %488 = vmatprep.subr.mxu0 0.0
    %489 = vmatpush2.xpose.msra.mxu0 0.0
    %490 = vmatprep.subr.mxu0 0.0
    %491 = vmatpush2.xpose.msra.mxu0 0.0
    %492 = vmatprep.subr.mxu0 0.0
    %493 = vmatpush2.xpose.msra.mxu0 0.0
    %494 = vmatprep.subr.mxu0 0.0
    %495 = vmatpush2.xpose.msra.mxu0 0.0
    %496 = vmatprep.subr.mxu0 0.0
    %497 = vmatpush2.xpose.msra.mxu0 0.0
    %498 = vmatprep.subr.mxu0 0.0
    %499 = vmatpush2.xpose.msra.mxu0 0.0
    %500 = vmatprep.subr.mxu0 0.0
    %501 = vmatpush2.xpose.msra.mxu0 0.0
    %502 = vmatprep.mubr.f32.mxu0 0.0
    %503 = vmatmul.mubr.f32.gmra.mxu0 %v264
    %v504 = vpop.f32.mrf.mxu0
    %v505 = vadd.f32 0.0, %v504
    %v506 = vpop.f32.mrf.mxu0
    %507 = vdwg.mxu0
    %v510 = vlaneseq
    %v511 = vshrl.u32 %v510, 7
    %v512 = vsub.s32 %v342, %v511
    %v513 = vrot.slane %v175, %v512
    %v514 = vlaneseq
    %v515 = vshrl.u32 %v514, 7
    %v516 = vsub.s32 %v342, %v515
    %v517 = vrot.slane %v178, %v516
    %v520 = vmul.f32 %v158, %v513
    %v521 = vmul.f32 %v161, %v517
    %v522 = vmax.f32 %v520, 1e-16
    %v523 = vmax.f32 %v521, 1e-16
    %v524 = vrsqrt.pop %v522
    %v525 = vrsqrt.pop %v523
    %v526 = vmul.f32 %v432, %v524
    %v527 = vmul.f32 %v505, %v525
    %v529 = vsel %vm164, %v90, 0
    %531 = vmatprep.subr.mxu0 0.0
    %532 = vmatpush1.xpose.msra.mxu0 0.0
    %533 = vmatprep.subr.mxu0 0.0
    %534 = vmatpush1.xpose.msra.mxu0 0.0
    %535 = vmatprep.subr.mxu0 0.0
    %536 = vmatpush1.xpose.msra.mxu0 0.0
    %537 = vmatprep.subr.mxu0 0.0
    %538 = vmatpush1.xpose.msra.mxu0 0.0
    %539 = vmatprep.subr.mxu0 0.0
    %540 = vmatpush1.xpose.msra.mxu0 0.0
    %541 = vmatprep.subr.mxu0 0.0
    %542 = vmatpush1.xpose.msra.mxu0 0.0
    %543 = vmatprep.subr.mxu0 0.0
    %544 = vmatpush1.xpose.msra.mxu0 0.0
    %545 = vmatprep.subr.mxu0 0.0
    %546 = vmatpush1.xpose.msra.mxu0 0.0
    %547 = vmatprep.subr.mxu0 0.0
    %548 = vmatpush1.xpose.msra.mxu0 0.0
    %549 = vmatprep.subr.mxu0 0.0
    %550 = vmatpush1.xpose.msra.mxu0 0.0
    %551 = vmatprep.subr.mxu0 0.0
    %552 = vmatpush1.xpose.msra.mxu0 0.0
    %553 = vmatprep.subr.mxu0 0.0
    %554 = vmatpush1.xpose.msra.mxu0 0.0
    %555 = vmatprep.subr.mxu0 0.0
    %556 = vmatpush1.xpose.msra.mxu0 0.0
    %557 = vmatprep.subr.mxu0 0.0
    %558 = vmatpush1.xpose.msra.mxu0 0.0
    %559 = vmatprep.subr.mxu0 0.0
    %560 = vmatpush1.xpose.msra.mxu0 0.0
    %561 = vmatprep.subr.mxu0 0.0
    %562 = vmatpush1.xpose.msra.mxu0 %v529
    %563 = vmatprep.subr.mxu0 0.0
    %564 = vmatpush2.xpose.msra.mxu0 0.0
    %565 = vmatprep.subr.mxu0 0.0
    %566 = vmatpush2.xpose.msra.mxu0 0.0
    %567 = vmatprep.subr.mxu0 0.0
    %568 = vmatpush2.xpose.msra.mxu0 0.0
    %569 = vmatprep.subr.mxu0 0.0
    %570 = vmatpush2.xpose.msra.mxu0 0.0
    %571 = vmatprep.subr.mxu0 0.0
    %572 = vmatpush2.xpose.msra.mxu0 0.0
    %573 = vmatprep.subr.mxu0 0.0
    %574 = vmatpush2.xpose.msra.mxu0 0.0
    %575 = vmatprep.subr.mxu0 0.0
    %576 = vmatpush2.xpose.msra.mxu0 0.0
    %577 = vmatprep.subr.mxu0 0.0
    %578 = vmatpush2.xpose.msra.mxu0 0.0
    %579 = vmatprep.subr.mxu0 0.0
    %580 = vmatpush2.xpose.msra.mxu0 0.0
    %581 = vmatprep.subr.mxu0 0.0
    %582 = vmatpush2.xpose.msra.mxu0 0.0
    %583 = vmatprep.subr.mxu0 0.0
    %584 = vmatpush2.xpose.msra.mxu0 0.0
    %585 = vmatprep.subr.mxu0 0.0
    %586 = vmatpush2.xpose.msra.mxu0 0.0
    %587 = vmatprep.subr.mxu0 0.0
    %588 = vmatpush2.xpose.msra.mxu0 0.0
    %589 = vmatprep.subr.mxu0 0.0
    %590 = vmatpush2.xpose.msra.mxu0 0.0
    %591 = vmatprep.subr.mxu0 0.0
    %592 = vmatpush2.xpose.msra.mxu0 0.0
    %593 = vmatprep.subr.mxu0 0.0
    %594 = vmatpush2.xpose.msra.mxu0 0.0
    %595 = vmatprep.mubr.f32.mxu0 0.0
    %596 = vmatmul.mubr.f32.gmra.mxu0 %v188
    %v597 = vpop.f32.mrf.mxu0
    %v598 = vadd.f32 0.0, %v597
    %v599 = vpop.f32.mrf.mxu0
    %600 = vdwg.mxu0
    %v602 = vsel %vm164, %v91, 0
    %604 = vmatprep.subr.mxu0 0.0
    %605 = vmatpush1.xpose.msra.mxu0 0.0
    %606 = vmatprep.subr.mxu0 0.0
    %607 = vmatpush1.xpose.msra.mxu0 0.0
    %608 = vmatprep.subr.mxu0 0.0
    %609 = vmatpush1.xpose.msra.mxu0 0.0
    %610 = vmatprep.subr.mxu0 0.0
    %611 = vmatpush1.xpose.msra.mxu0 0.0
    %612 = vmatprep.subr.mxu0 0.0
    %613 = vmatpush1.xpose.msra.mxu0 0.0
    %614 = vmatprep.subr.mxu0 0.0
    %615 = vmatpush1.xpose.msra.mxu0 0.0
    %616 = vmatprep.subr.mxu0 0.0
    %617 = vmatpush1.xpose.msra.mxu0 0.0
    %618 = vmatprep.subr.mxu0 0.0
    %619 = vmatpush1.xpose.msra.mxu0 0.0
    %620 = vmatprep.subr.mxu0 0.0
    %621 = vmatpush1.xpose.msra.mxu0 0.0
    %622 = vmatprep.subr.mxu0 0.0
    %623 = vmatpush1.xpose.msra.mxu0 0.0
    %624 = vmatprep.subr.mxu0 0.0
    %625 = vmatpush1.xpose.msra.mxu0 0.0
    %626 = vmatprep.subr.mxu0 0.0
    %627 = vmatpush1.xpose.msra.mxu0 0.0
    %628 = vmatprep.subr.mxu0 0.0
    %629 = vmatpush1.xpose.msra.mxu0 0.0
    %630 = vmatprep.subr.mxu0 0.0
    %631 = vmatpush1.xpose.msra.mxu0 0.0
    %632 = vmatprep.subr.mxu0 0.0
    %633 = vmatpush1.xpose.msra.mxu0 0.0
    %634 = vmatprep.subr.mxu0 0.0
    %635 = vmatpush1.xpose.msra.mxu0 %v602
    %636 = vmatprep.subr.mxu0 0.0
    %637 = vmatpush2.xpose.msra.mxu0 0.0
    %638 = vmatprep.subr.mxu0 0.0
    %639 = vmatpush2.xpose.msra.mxu0 0.0
    %640 = vmatprep.subr.mxu0 0.0
    %641 = vmatpush2.xpose.msra.mxu0 0.0
    %642 = vmatprep.subr.mxu0 0.0
    %643 = vmatpush2.xpose.msra.mxu0 0.0
    %644 = vmatprep.subr.mxu0 0.0
    %645 = vmatpush2.xpose.msra.mxu0 0.0
    %646 = vmatprep.subr.mxu0 0.0
    %647 = vmatpush2.xpose.msra.mxu0 0.0
    %648 = vmatprep.subr.mxu0 0.0
    %649 = vmatpush2.xpose.msra.mxu0 0.0
    %650 = vmatprep.subr.mxu0 0.0
    %651 = vmatpush2.xpose.msra.mxu0 0.0
    %652 = vmatprep.subr.mxu0 0.0
    %653 = vmatpush2.xpose.msra.mxu0 0.0
    %654 = vmatprep.subr.mxu0 0.0
    %655 = vmatpush2.xpose.msra.mxu0 0.0
    %656 = vmatprep.subr.mxu0 0.0
    %657 = vmatpush2.xpose.msra.mxu0 0.0
    %658 = vmatprep.subr.mxu0 0.0
    %659 = vmatpush2.xpose.msra.mxu0 0.0
    %660 = vmatprep.subr.mxu0 0.0
    %661 = vmatpush2.xpose.msra.mxu0 0.0
    %662 = vmatprep.subr.mxu0 0.0
    %663 = vmatpush2.xpose.msra.mxu0 0.0
    %664 = vmatprep.subr.mxu0 0.0
    %665 = vmatpush2.xpose.msra.mxu0 0.0
    %666 = vmatprep.subr.mxu0 0.0
    %667 = vmatpush2.xpose.msra.mxu0 0.0
    %668 = vmatprep.mubr.f32.mxu0 0.0
    %669 = vmatmul.mubr.f32.gmra.mxu0 %v264
    %v670 = vpop.f32.mrf.mxu0
    %v671 = vadd.f32 0.0, %v670
    %v672 = vpop.f32.mrf.mxu0
    %673 = vdwg.mxu0
    %v676 = vlaneseq
    %v677 = vshrl.u32 %v676, 7
    %v678 = vsub.s32 %v342, %v677
    %v679 = vrot.slane %v183, %v678
    %v680 = vlaneseq
    %v681 = vshrl.u32 %v680, 7
    %v682 = vsub.s32 %v342, %v681
    %v683 = vrot.slane %v186, %v682
    %v686 = vmul.f32 %v158, %v679
    %v687 = vmul.f32 %v161, %v683
    %v688 = vmax.f32 %v686, 1e-16
    %v689 = vmax.f32 %v687, 1e-16
    %v690 = vrsqrt.pop %v688
    %v691 = vrsqrt.pop %v689
    %v692 = vmul.f32 %v598, %v690
    %v693 = vmul.f32 %v671, %v691
    %v696 = vrot.slane %v527, 7
    %vm697 = vcmask 1042434
    %v698 = vsel %vm697, %v696, %v526
    %vm700 = vcmask 59393
    %v701 = vsel %vm700, %v698, -inf
    %702 = vmax.xlane.f32.xlu0 %v701
    %v703 = vpop.xlane.xlu0 %702
    %v706 = vrot.slane %v693, 7
    %v707 = vsel %vm697, %v706, %v692
    %v709 = vsel %vm700, %v707, -inf
    %710 = vmax.xlane.f32.xlu0 %v709
    %v711 = vpop.xlane.xlu0 %710
    %v712 = vmax.f32 %v703, %v711
    %v714 = vrot.slane %v712, 1
    %vm717 = vcmp.gt.f32.partialorder %v360, %v712
    %vm718 = vcmp.gt.f32.partialorder %v361, %v714
    %v719 = vsel %vm717, 1, 0
    %v720 = vsel %vm718, 1, 0
    %v721 = vcvt.s32.f32 %v719
    %v722 = vcvt.s32.f32 %v720
    %v725 = vrot.slane %v722, 7
    %v726 = vsel %vm697, %v725, %v721
    %v728 = vsel %vm700, %v726, 0.0
    %729 = vadd.xlane.f32.xlu0 %v728
    %v730 = vpop.xlane.xlu0 %729
    %v731 = vmul.f32 %v730, 0.125
    %v732 = vsub.f32 1.0, %v731
    %vm733 = vcmp.ge.f32.partialorder %v703, %v711
    %v734 = vsel %vm733, 1.0, 0.0
    %v735 = vsel %vm351, %v696, %v526
    %vm737 = vcmask 58368
    %v738 = vsel %vm737, %v735, 0.0
    %739 = vadd.xlane.f32.xlu0 %v738
    %v740 = vpop.xlane.xlu0 %739
    %v741 = vsel %vm351, %v706, %v692
    %v743 = vsel %vm737, %v741, 0.0
    %744 = vadd.xlane.f32.xlu0 %v743
    %v745 = vpop.xlane.xlu0 %744
    %v746 = vadd.f32 %v740, %v745
    %v747 = vmul.f32 %v746, 0.0625
    %v750 = vrot.slane %v361, 7
    %v751 = vsel %vm351, %v750, %v360
    %v753 = vsel %vm737, %v751, 0.0
    %754 = vadd.xlane.f32.xlu0 %v753
    %v755 = vpop.xlane.xlu0 %754
    %v756 = vmul.f32 %v755, 0.125
    %v757 = vsub.f32 %v747, %v756
    %v759 = vrot.slane %v732, 1
    %v761 = vmul.f32 %v757, %v759
    %v762 = vadd.f32 %v761, 0.2
    %v763 = vmax.f32 %v762, 0.0
    %vm764 = vcmask 1024
    %v765 = vsel %vm764, %v763, 0.0
    %766 = vadd.xlane.f32.xlu0 %v765
    %v767 = vpop.xlane.xlu0 %766
    %v768 = vrot.slane %v767, 4
    %v769 = vadd.f32 %v767, %v768
    %v770 = vrot.slane %v769, 2
    %v771 = vadd.f32 %v769, %v770
    %v772 = vrot.slane %v771, 1
    %v773 = vadd.f32 %v771, %v772
    %s774 = vtos %v773
    %v775 = vsel %vm764, %v759, 0.0
    %776 = vadd.xlane.f32.xlu0 %v775
    %v777 = vpop.xlane.xlu0 %776
    %v778 = vrot.slane %v777, 4
    %v779 = vadd.f32 %v777, %v778
    %v780 = vrot.slane %v779, 2
    %v781 = vadd.f32 %v779, %v780
    %v782 = vrot.slane %v781, 1
    %v783 = vadd.f32 %v781, %v782
    %s784 = vtos %v783
    %v786 = vrot.slane %v734, 1
    %v788 = vsel %vm764, %v786, 0.0
    %789 = vadd.xlane.f32.xlu0 %v788
    %v790 = vpop.xlane.xlu0 %789
    %v791 = vrot.slane %v790, 4
    %v792 = vadd.f32 %v790, %v791
    %v793 = vrot.slane %v792, 2
    %v794 = vadd.f32 %v792, %v793
    %v795 = vrot.slane %v794, 1
    %v796 = vadd.f32 %v794, %v795
    %s797 = vtos %v796
    %vm798 = vcmp.eq.s32.totalorder %v342, 0
    %v799 = vstv %s774
    %v800 = vsel %vm798, %v799, 0.0
    %vm801 = vcmp.eq.s32.totalorder %v342, 1
    %v802 = vstv %s784
    %v803 = vsel %vm801, %v802, 0.0
    %v804 = vadd.f32 %v800, %v803
    %vm805 = vcmp.eq.s32.totalorder %v342, 2
    %v806 = vstv %s797
    %v807 = vsel %vm805, %v806, 0.0
    %v808 = vadd.f32 %v804, %v807
    %809 = vst [vmem:[%s5] sm:$0xff] %v808
    // Predicated region
    $region42: #{multi_objective_scoring_loss.1} parent=1 // pred_check
      _
    $region43: #{multi_objective_scoring_loss.1} parent=1 // pred_check_branch
      %811 = sbr.rel (0) target = $region45
    $region44: #{multi_objective_scoring_loss.1} parent=1 // pred_region
      _
    $region45: #{multi_objective_scoring_loss.1} parent=1 // pred_fallthru
      _
    // Predicated region
    $region46: #{multi_objective_scoring_loss.1} parent=1 // pred_check
      _
    $region47: #{multi_objective_scoring_loss.1} parent=1 // pred_check_branch
      %813 = sbr.rel (0) target = $region49
    $region48: #{multi_objective_scoring_loss.1} parent=1 // pred_region
      _
    $region49: #{multi_objective_scoring_loss.1} parent=1 // pred_fallthru
      _
    %814 = vsyncpa [#allocation3], 1
    %815 = vsyncpa [#allocation5], 1
    %816 = vsyncpa [#allocation8], 1

</llo_original>
